<compile_context>
chip_gen: v7x
topology: tpu7x:2x2x1
jax: 0.10.0
libtpu: 0.0.40
codegen_flags: <defaults>
</compile_context>

<pallas_src>
import math

import jax
import jax.numpy as jnp
from jax import lax
from jax.experimental import pallas as pl
from jax.experimental.pallas import tpu as pltpu


def _round_up(v, m):
    return (v + m - 1) // m * m


# ---------------------------------------------------------------------------
# Kernels
# ---------------------------------------------------------------------------
def _linear_single_k_kernel(x_ref, w_ref, b_ref, o_ref):
    """One (i, j) output tile; the whole K dimension fits in one tile.

    x_ref: (tm, tk)  activations
    w_ref: (tn, tk)  weight in PyTorch (N, K) layout -> contract on axis 1 of both
    b_ref: (1, tn)   bias
    """
    acc = lax.dot_general(
        x_ref[...], w_ref[...],
        dimension_numbers=(((1,), (1,)), ((), ())),   # x @ w.T on the MXU
        preferred_element_type=jnp.float32,
    )
    o_ref[...] = (acc + b_ref[...].astype(jnp.float32)).astype(o_ref.dtype)


def _linear_accum_kernel(x_ref, w_ref, b_ref, o_ref, acc_ref):
    """(i, j, k) grid step with the K reduction accumulated in VMEM scratch."""
    k = pl.program_id(2)

    @pl.when(k == 0)
    def _():
        acc_ref[...] = jnp.zeros_like(acc_ref)

    acc_ref[...] += lax.dot_general(
        x_ref[...], w_ref[...],
        dimension_numbers=(((1,), (1,)), ((), ())),   # x @ w.T on the MXU
        preferred_element_type=jnp.float32,
    )

    @pl.when(k == pl.num_programs(2) - 1)
    def _():
        o_ref[...] = (acc_ref[...] + b_ref[...].astype(jnp.float32)).astype(o_ref.dtype)


# ---------------------------------------------------------------------------
# Wrapper
# ---------------------------------------------------------------------------
def pallas_linear(x, weight, bias, *, tm=256, tn=512, tk=1024):
    """out = x @ weight.T + bias via a Pallas TPU kernel.

    x:      (M, K) float32
    weight: (N, K) float32  (PyTorch nn.Linear convention; NOT transposed here)
    bias:   (N,)   float32
    """
    M, K = x.shape
    N, K2 = weight.shape
    assert K == K2, f"in_features mismatch: {K} vs {K2}"
    out_dtype = x.dtype

    # Clamp tiles to the (alignment-rounded) problem size: never bigger than the
    # array, but keep sublane(8)/lane(128) alignment so all vld/vst are unmasked.
    tm = min(tm, _round_up(M, 8))
    tn = min(tn, _round_up(N, 128))
    tk = min(tk, _round_up(K, 128))

    Mp, Np, Kp = _round_up(M, tm), _round_up(N, tn), _round_up(K, tk)

    # Explicit zero-padding (cheap) so the K reduction never reads garbage and
    # the grid has no ragged edges.
    if (Mp, Kp) != (M, K):
        x = jnp.pad(x, ((0, Mp - M), (0, Kp - K)))
    if (Np, Kp) != (N, K):
        weight = jnp.pad(weight, ((0, Np - N), (0, Kp - K)))
    if Np != N:
        bias = jnp.pad(bias, (0, Np - N))
    b2 = bias.reshape(1, Np)

    mt, nt, kt = Mp // tm, Np // tn, Kp // tk

    # NOTE: casting x/weight to bfloat16 here (keeping the f32 accumulator)
    # would halve HBM traffic; left off to preserve exact f32 semantics.

    if kt == 1:
        # K fits in a single tile: 2-D grid, no accumulator scratch, bias fused.
        out = pl.pallas_call(
            _linear_single_k_kernel,
            out_shape=jax.ShapeDtypeStruct((Mp, Np), out_dtype),
            grid_spec=pltpu.PrefetchScalarGridSpec(
                num_scalar_prefetch=0,
                grid=(mt, nt),
                in_specs=[
                    pl.BlockSpec((tm, tk), lambda i, j: (i, 0)),   # x tile
                    pl.BlockSpec((tn, tk), lambda i, j: (j, 0)),   # weight (N,K) tile
                    pl.BlockSpec((1, tn), lambda i, j: (0, j)),    # bias tile
                ],
                out_specs=pl.BlockSpec((tm, tn), lambda i, j: (i, j)),
            ),
            compiler_params=pltpu.CompilerParams(
                dimension_semantics=("parallel", "parallel"),
                vmem_limit_bytes=32 * 1024 * 1024,
            ),
        )(x, weight, b2)
    else:
        # K-tiled reduction with f32 VMEM accumulator, K innermost.
        out = pl.pallas_call(
            _linear_accum_kernel,
            out_shape=jax.ShapeDtypeStruct((Mp, Np), out_dtype),
            grid_spec=pltpu.PrefetchScalarGridSpec(
                num_scalar_prefetch=0,
                grid=(mt, nt, kt),
                in_specs=[
                    pl.BlockSpec((tm, tk), lambda i, j, k: (i, k)),   # x tile
                    pl.BlockSpec((tn, tk), lambda i, j, k: (j, k)),   # weight (N,K) tile
                    pl.BlockSpec((1, tn), lambda i, j, k: (0, j)),    # bias tile
                ],
                out_specs=pl.BlockSpec((tm, tn), lambda i, j, k: (i, j)),
                scratch_shapes=[pltpu.VMEM((tm, tn), jnp.float32)],
            ),
            compiler_params=pltpu.CompilerParams(
                dimension_semantics=("parallel", "parallel", "arbitrary"),
                vmem_limit_bytes=32 * 1024 * 1024,
            ),
        )(x, weight, b2)

    if (Mp, Np) != (M, N):
        out = out[:M, :N]
    return out


def init_params(key, in_features, out_features):
    """Deterministic xavier_uniform_ weight + zero bias (matches __init__)."""
    bound = math.sqrt(6.0 / (in_features + out_features))
    weight = jax.random.uniform(
        key, (out_features, in_features), jnp.float32, minval=-bound, maxval=bound
    )
    bias = jnp.zeros((out_features,), jnp.float32)
    return weight, bias


# TODO(synk): the device_id!=None branch (model-parallel chunking of weight
# across GPUs + torch.cat) is a multi-device placement concern, not an op; the
# single-device math is identical to F.linear and is what is implemented here.

if __name__ == "__main__":
    key = jax.random.PRNGKey(0)
    k_x, k_w, k_x2, k_w2, k_x3, k_w3 = jax.random.split(key, 6)

    # --- 1) Classification-head shapes (single-shot path: grid (1,1)) -------
    batch, in_features, out_features = 8, 128, 256
    x = jax.random.normal(k_x, (batch, in_features), jnp.float32)
    weight, bias = init_params(k_w, in_features, out_features)

    out = jax.block_until_ready(pallas_linear(x, weight, bias))
    ref = jnp.dot(x, weight.T, precision=lax.Precision.HIGHEST) + bias
    assert out.shape == (batch, out_features)
    assert jnp.allclose(out, ref, atol=5e-3, rtol=5e-3)

    # --- 2) Larger shape exercising the K-reduction accumulator path --------
    M2, K2, N2 = 256, 2048, 512
    x2 = jax.random.normal(k_x2, (M2, K2), jnp.float32)
    w2, b2 = init_params(k_w2, K2, N2)
    b2 = b2 + 0.1  # non-zero bias to make sure the bias add is checked

    out2 = jax.block_until_ready(pallas_linear(x2, w2, b2))
    ref2 = jnp.dot(x2, w2.T, precision=lax.Precision.HIGHEST) + b2
    assert out2.shape == (M2, N2)
    assert jnp.allclose(out2, ref2, atol=5e-3, rtol=5e-3)

    # --- 3) Ragged shapes exercising the zero-padding path ------------------
    M3, K3, N3 = 5, 100, 130
    x3 = jax.random.normal(k_x3, (M3, K3), jnp.float32)
    w3, b3 = init_params(k_w3, K3, N3)
    b3 = b3 - 0.25

    out3 = jax.block_until_ready(pallas_linear(x3, w3, b3))
    ref3 = jnp.dot(x3, w3.T, precision=lax.Precision.HIGHEST) + b3
    assert out3.shape == (M3, N3)
    assert jnp.allclose(out3, ref3, atol=5e-3, rtol=5e-3)

    print("KERNEL_OK")
</pallas_src>

<mosaic_0001>
module attributes {stable_mosaic.version = 11 : i64} {
  func.func @_linear_single_k_kernel(%arg0: i32, %arg1: i32, %arg2: memref<8x128xf32, #tpu.memory_space<vmem>>, %arg3: memref<256x128xf32, #tpu.memory_space<vmem>>, %arg4: memref<1x256xf32, #tpu.memory_space<vmem>>, %arg5: memref<8x256xf32, #tpu.memory_space<vmem>>) attributes {dimension_semantics = [#tpu.dimension_semantics<parallel>, #tpu.dimension_semantics<parallel>], iteration_bounds = array<i64: 1, 1>, scalar_prefetch = 0 : i64, scratch_operands = 0 : i64, tpu.core_type = #tpu.core_type<tc>, window_params = [{transform_indices = @transform_0, window_bounds = array<i64: 8, 128>}, {transform_indices = @transform_1, window_bounds = array<i64: 256, 128>}, {transform_indices = @transform_2, window_bounds = array<i64: 1, 256>}, {transform_indices = @transform_3, window_bounds = array<i64: 8, 256>}]} {
    %c0 = arith.constant 0 : index
    %c0_0 = arith.constant 0 : index
    %0 = vector.load %arg2[%c0, %c0_0] : memref<8x128xf32, #tpu.memory_space<vmem>>, vector<8x128xf32>
    %c0_1 = arith.constant 0 : index
    %c0_2 = arith.constant 0 : index
    %1 = vector.load %arg3[%c0_1, %c0_2] : memref<256x128xf32, #tpu.memory_space<vmem>>, vector<256x128xf32>
    %cst = arith.constant dense<0.000000e+00> : vector<8x256xf32>
    %2 = tpu.matmul %0, %1, %cst {dimension_numbers = #tpu.dot_dimension_numbers<[1], [1], [0], [0], [0, 0, 1, 0], [], []>} : vector<8x128xf32>, vector<256x128xf32>, vector<8x256xf32> -> vector<8x256xf32>
    %c0_3 = arith.constant 0 : index
    %c0_4 = arith.constant 0 : index
    %3 = vector.load %arg4[%c0_3, %c0_4] : memref<1x256xf32, #tpu.memory_space<vmem>>, vector<1x256xf32>
    %4 = vector.broadcast %3 : vector<1x256xf32> to vector<8x256xf32>
    %5 = arith.addf %2, %4 : vector<8x256xf32>
    %c0_5 = arith.constant 0 : index
    %c0_6 = arith.constant 0 : index
    %6 = vector.load %arg5[%c0_5, %c0_6] : memref<8x256xf32, #tpu.memory_space<vmem>>, vector<8x256xf32>
    tpu.vector_store %arg5[%c0_5, %c0_6], %5 {strides = array<i32>} : memref<8x256xf32, #tpu.memory_space<vmem>>, vector<8x256xf32>,
    return
  }
  func.func @transform_0(%arg0: i32, %arg1: i32) -> (i32, i32) {
    %c0_i32 = arith.constant 0 : i32
    %c0_i32_0 = arith.constant 0 : i32
    return %arg0, %c0_i32 : i32, i32
  }
  func.func @transform_1(%arg0: i32, %arg1: i32) -> (i32, i32) {
    %c0_i32 = arith.constant 0 : i32
    %c0_i32_0 = arith.constant 0 : i32
    return %arg1, %c0_i32 : i32, i32
  }
  func.func @transform_2(%arg0: i32, %arg1: i32) -> (i32, i32) {
    %c0_i32 = arith.constant 0 : i32
    %c0_i32_0 = arith.constant 0 : i32
    return %c0_i32, %arg1 : i32, i32
  }
  func.func @transform_3(%arg0: i32, %arg1: i32) -> (i32, i32) {
    %c0_i32 = arith.constant 0 : i32
    return %arg0, %arg1 : i32, i32
  }
}

</mosaic_0001>

<llo_original>
// kernel: tpu_custom_call.1
$region0: #{tpu_custom_call.1}
  #allocation0 [shape = 'u32[]', space=smem, size = 0x4, offset = 0x4, fixed_abs, tag = 'smem constant byte address 0x4 - core index']
  #allocation1 [shape = 'u32[144,128]{1,0:T(1,128)}', space=vmem, size = 0x12000, scoped, tag = 'internal scratch']
  %s0 = inlined_call_operand.hbm [shape: f32[8,128], index: 0, kind: input, shape index: {}]
  %s1 = inlined_call_operand.hbm [shape: f32[256,128], index: 1, kind: input, shape index: {}]
  %s2 = inlined_call_operand.vmem [shape: f32[1,256], index: 2, kind: input, shape index: {}]
  %s3 = inlined_call_operand.hbm [shape: f32[8,256], index: 3, kind: output, shape index: {}]
  %s4 = sld [smem:[#allocation0]]
  $region30: #{tpu_custom_call.1} parent=0
    _
  %s6 = ssub.s32 1, %s4
  %s7 = scalar_select 0, %s6, %s4
  $region1: #{tpu_custom_call.1} parent=0
    #allocation2 [shape = 'u8[4096]{0}', space=vmem, size = 0x1000, scoped, tag = 'input window, operand 0, single buffered']
    #allocation3 [shape = 's32[1]{0}', space=sflag, size = 0x4, scoped, tag = 'scoped memory for tpu_custom_call.1']
    #allocation4 [shape = 's32[1]{0}', space=sflag, size = 0x4, scoped, tag = 'scoped memory for tpu_custom_call.1']
    #allocation5 [shape = 'u8[131072]{0}', space=vmem, size = 0x20000, scoped, tag = 'input window, operand 1, single buffered']
    #allocation6 [shape = 's32[1]{0}', space=sflag, size = 0x4, scoped, tag = 'scoped memory for tpu_custom_call.1']
    #allocation7 [shape = 'u8[8192]{0}', space=vmem, size = 0x2000, scoped, tag = 'output window, operand 0, single buffered']
    %8 = vsyncpa [#allocation3], 0
    %9 = vsyncpa [#allocation6], 0
    %10 = vsyncpa [#allocation4], 0
    // Predicated region
    $region2: #{tpu_custom_call.1} parent=1 // pred_check
      _
    $region3: #{tpu_custom_call.1} parent=1 // pred_check_branch
      %12 = sbr.rel (0) target = $region5
    $region4: #{tpu_custom_call.1} parent=1 // pred_region
      %s14 = ssub.s32 128, 128
      %15 = vsyncadd [#allocation3], %s14
      %s17 = sshll.u32 [#allocation2], 4
      %s18 = int_to_ptr.vmem [resolvable:$true] %s17
      %20 = dma.hbm_to_vmem [thread:$0]  %s0, 128, %s18, [#allocation3]
    $region5: #{tpu_custom_call.1} parent=1 // pred_fallthru
      _
    // Predicated region
    $region6: #{tpu_custom_call.1} parent=1 // pred_check
      _
    $region7: #{tpu_custom_call.1} parent=1 // pred_check_branch
      %22 = sbr.rel (0) target = $region9
    $region8: #{tpu_custom_call.1} parent=1 // pred_region
      %s24 = ssub.s32 4096, 4096
      %25 = vsyncadd [#allocation6], %s24
      %s26 = sshll.u32 [#allocation5], 4
      %s27 = int_to_ptr.vmem [resolvable:$true] %s26
      %32 = dma.hbm_to_vmem [thread:$0]  %s1, 4096, %s27, [#allocation6], 128, 128, 8
    $region9: #{tpu_custom_call.1} parent=1 // pred_fallthru
      _
    // Predicated region
    $region10: #{tpu_custom_call.1} parent=1 // pred_check
      _
    $region11: #{tpu_custom_call.1} parent=1 // pred_check_branch
      %34 = sbr.rel (0) target = $region13
    $region12: #{tpu_custom_call.1} parent=1 // pred_region
      _
    $region13: #{tpu_custom_call.1} parent=1 // pred_fallthru
      _
    // Predicated region
    $region14: #{tpu_custom_call.1} parent=1 // pred_check
      _
    $region15: #{tpu_custom_call.1} parent=1 // pred_check_branch
      %36 = sbr.rel (0) target = $region17
    $region16: #{tpu_custom_call.1} parent=1 // pred_region
      %37 = dma.done [#allocation3], 128
    $region17: #{tpu_custom_call.1} parent=1 // pred_fallthru
      _
    // Predicated region
    $region18: #{tpu_custom_call.1} parent=1 // pred_check
      _
    $region19: #{tpu_custom_call.1} parent=1 // pred_check_branch
      %39 = sbr.rel (0) target = $region21
    $region20: #{tpu_custom_call.1} parent=1 // pred_region
      %40 = dma.done [#allocation6], 4096
    $region21: #{tpu_custom_call.1} parent=1 // pred_fallthru
      _
    %v41 = vld [vmem:[#allocation2] sm:$0xff]
    %v42 = vld [vmem:[#allocation5] sm:$0xff]
    %v43 = vld [vmem:[#allocation5 + $0x8] sm:$0xff]
    %v44 = vld [vmem:[#allocation5 + $0x10] sm:$0xff]
    %v45 = vld [vmem:[#allocation5 + $0x18] sm:$0xff]
    %v46 = vld [vmem:[#allocation5 + $0x20] sm:$0xff]
    %v47 = vld [vmem:[#allocation5 + $0x28] sm:$0xff]
    %v48 = vld [vmem:[#allocation5 + $0x30] sm:$0xff]
    %v49 = vld [vmem:[#allocation5 + $0x38] sm:$0xff]
    %v50 = vld [vmem:[#allocation5 + $0x40] sm:$0xff]
    %v51 = vld [vmem:[#allocation5 + $0x48] sm:$0xff]
    %v52 = vld [vmem:[#allocation5 + $0x50] sm:$0xff]
    %v53 = vld [vmem:[#allocation5 + $0x58] sm:$0xff]
    %v54 = vld [vmem:[#allocation5 + $0x60] sm:$0xff]
    %v55 = vld [vmem:[#allocation5 + $0x68] sm:$0xff]
    %v56 = vld [vmem:[#allocation5 + $0x70] sm:$0xff]
    %v57 = vld [vmem:[#allocation5 + $0x78] sm:$0xff]
    %v58 = vld [vmem:[#allocation5 + $0x80] sm:$0xff]
    %v59 = vld [vmem:[#allocation5 + $0x88] sm:$0xff]
    %v60 = vld [vmem:[#allocation5 + $0x90] sm:$0xff]
    %v61 = vld [vmem:[#allocation5 + $0x98] sm:$0xff]
    %v62 = vld [vmem:[#allocation5 + $0xa0] sm:$0xff]
    %v63 = vld [vmem:[#allocation5 + $0xa8] sm:$0xff]
    %v64 = vld [vmem:[#allocation5 + $0xb0] sm:$0xff]
    %v65 = vld [vmem:[#allocation5 + $0xb8] sm:$0xff]
    %v66 = vld [vmem:[#allocation5 + $0xc0] sm:$0xff]
    %v67 = vld [vmem:[#allocation5 + $0xc8] sm:$0xff]
    %v68 = vld [vmem:[#allocation5 + $0xd0] sm:$0xff]
    %v69 = vld [vmem:[#allocation5 + $0xd8] sm:$0xff]
    %v70 = vld [vmem:[#allocation5 + $0xe0] sm:$0xff]
    %v71 = vld [vmem:[#allocation5 + $0xe8] sm:$0xff]
    %v72 = vld [vmem:[#allocation5 + $0xf0] sm:$0xff]
    %v73 = vld [vmem:[#allocation5 + $0xf8] sm:$0xff]
    %v74 = vld [vmem:[%s2] sm:$0x3]
    %v76 = vlaneseq
    %v77 = vshrl.u32 %v76, 7
    %v78 = vsub.s32 0, %v77
    %v79 = vrot.slane %v74, %v78
    %v80 = vlaneseq
    %v81 = vshrl.u32 %v80, 7
    %v82 = vsub.s32 1, %v81
    %v83 = vrot.slane %v74, %v82
    %86 = vmatprep.subr.mxu0 0.0
    %87 = vmatpush1.xpose.msra.mxu0 %v42
    %88 = vmatprep.subr.mxu0 0.0
    %89 = vmatpush1.xpose.msra.mxu0 %v43
    %90 = vmatprep.subr.mxu0 0.0
    %91 = vmatpush1.xpose.msra.mxu0 %v44
    %92 = vmatprep.subr.mxu0 0.0
    %93 = vmatpush1.xpose.msra.mxu0 %v45
    %94 = vmatprep.subr.mxu0 0.0
    %95 = vmatpush1.xpose.msra.mxu0 %v46
    %96 = vmatprep.subr.mxu0 0.0
    %97 = vmatpush1.xpose.msra.mxu0 %v47
    %98 = vmatprep.subr.mxu0 0.0
    %99 = vmatpush1.xpose.msra.mxu0 %v48
    %100 = vmatprep.subr.mxu0 0.0
    %101 = vmatpush1.xpose.msra.mxu0 %v49
    %102 = vmatprep.subr.mxu0 0.0
    %103 = vmatpush1.xpose.msra.mxu0 %v50
    %104 = vmatprep.subr.mxu0 0.0
    %105 = vmatpush1.xpose.msra.mxu0 %v51
    %106 = vmatprep.subr.mxu0 0.0
    %107 = vmatpush1.xpose.msra.mxu0 %v52
    %108 = vmatprep.subr.mxu0 0.0
    %109 = vmatpush1.xpose.msra.mxu0 %v53
    %110 = vmatprep.subr.mxu0 0.0
    %111 = vmatpush1.xpose.msra.mxu0 %v54
    %112 = vmatprep.subr.mxu0 0.0
    %113 = vmatpush1.xpose.msra.mxu0 %v55
    %114 = vmatprep.subr.mxu0 0.0
    %115 = vmatpush1.xpose.msra.mxu0 %v56
    %116 = vmatprep.subr.mxu0 0.0
    %117 = vmatpush1.xpose.msra.mxu0 %v57
    %118 = vmatprep.subr.mxu0 0.0
    %119 = vmatpush1.xpose.msra.mxu0 %v58
    %120 = vmatprep.subr.mxu0 0.0
    %121 = vmatpush1.xpose.msra.mxu0 %v59
    %122 = vmatprep.subr.mxu0 0.0
    %123 = vmatpush1.xpose.msra.mxu0 %v60
    %124 = vmatprep.subr.mxu0 0.0
    %125 = vmatpush1.xpose.msra.mxu0 %v61
    %126 = vmatprep.subr.mxu0 0.0
    %127 = vmatpush1.xpose.msra.mxu0 %v62
    %128 = vmatprep.subr.mxu0 0.0
    %129 = vmatpush1.xpose.msra.mxu0 %v63
    %130 = vmatprep.subr.mxu0 0.0
    %131 = vmatpush1.xpose.msra.mxu0 %v64
    %132 = vmatprep.subr.mxu0 0.0
    %133 = vmatpush1.xpose.msra.mxu0 %v65
    %134 = vmatprep.subr.mxu0 0.0
    %135 = vmatpush1.xpose.msra.mxu0 %v66
    %136 = vmatprep.subr.mxu0 0.0
    %137 = vmatpush1.xpose.msra.mxu0 %v67
    %138 = vmatprep.subr.mxu0 0.0
    %139 = vmatpush1.xpose.msra.mxu0 %v68
    %140 = vmatprep.subr.mxu0 0.0
    %141 = vmatpush1.xpose.msra.mxu0 %v69
    %142 = vmatprep.subr.mxu0 0.0
    %143 = vmatpush1.xpose.msra.mxu0 %v70
    %144 = vmatprep.subr.mxu0 0.0
    %145 = vmatpush1.xpose.msra.mxu0 %v71
    %146 = vmatprep.subr.mxu0 0.0
    %147 = vmatpush1.xpose.msra.mxu0 %v72
    %148 = vmatprep.subr.mxu0 0.0
    %149 = vmatpush1.xpose.msra.mxu0 %v73
    %150 = vmatprep.mubr.f32.mxu0 0.0
    %151 = vmatmul.mubr.f32.gmra.mrb[0].mxu0 %v41
    %v152 = vpop.f32.mrb[0].mxu0
    %v153 = vadd.f32 %v79, %v152
    %v154 = vpop.f32.mrb[0].mxu0
    %v155 = vadd.f32 %v83, %v154
    %156 = vdwg.mxu0
    %157 = vst [vmem:[#allocation7] sm:$0xff] %v153
    %158 = vst [vmem:[#allocation7 + $0x8] sm:$0xff] %v155
    // Predicated region
    $region22: #{tpu_custom_call.1} parent=1 // pred_check
      _
    $region23: #{tpu_custom_call.1} parent=1 // pred_check_branch
      %160 = sbr.rel (0) target = $region25
    $region24: #{tpu_custom_call.1} parent=1 // pred_region
      %s162 = ssub.s32 256, 256
      %163 = vsyncadd [#allocation4], %s162
      %s165 = sshll.u32 [#allocation7], 4
      %s166 = int_to_ptr.vmem [resolvable:$true] %s165
      %168 = dma.vmem_to_hbm [thread:$0]  %s166, 256, %s3, [#allocation4]
    $region25: #{tpu_custom_call.1} parent=1 // pred_fallthru
      _
    // Predicated region
    $region26: #{tpu_custom_call.1} parent=1 // pred_check
      _
    $region27: #{tpu_custom_call.1} parent=1 // pred_check_branch
      %170 = sbr.rel (0) target = $region29
    $region28: #{tpu_custom_call.1} parent=1 // pred_region
      %171 = dma.done [#allocation4], 256
    $region29: #{tpu_custom_call.1} parent=1 // pred_fallthru
      _
    %172 = vsyncpa [#allocation3], 1
    %173 = vsyncpa [#allocation6], 1
    %174 = vsyncpa [#allocation4], 1

</llo_original>
